<compile_context>
chip_gen: v7x
topology: tpu7x:2x2x1
jax: 0.10.0
libtpu: 0.0.40
codegen_flags: <defaults>
</compile_context>

<pallas_src>
import jax
import jax.numpy as jnp
from jax.experimental import pallas as pl
from jax.experimental.pallas import tpu as pltpu

INPUT_DIM = 5
OUTPUT_DIM = 2
HIDDEN = (64, 32, 16)
BN_EPS = 1e-5


def _noise_filter_kernel(x_ref,
                         w1_ref, b1_ref,
                         w2_ref, b2_ref,
                         w3_ref, b3_ref,
                         w4d_ref, b4d_ref,
                         o_ref):
    # Feature-major: rows = features (sublanes), cols = points (lanes).
    h = x_ref[...]                                                                        # (5, T)
    h = jnp.maximum(
        jnp.dot(w1_ref[...], h, preferred_element_type=jnp.float32) + b1_ref[...], 0.0)  # (64, T)
    h = jnp.maximum(
        jnp.dot(w2_ref[...], h, preferred_element_type=jnp.float32) + b2_ref[...], 0.0)  # (32, T)
    h = jnp.maximum(
        jnp.dot(w3_ref[...], h, preferred_element_type=jnp.float32) + b3_ref[...], 0.0)  # (16, T)

    # 2-class log-softmax only needs the logit difference d = l1 - l0:
    #   out0 = -softplus(d),  out1 = d - softplus(d)
    d = jnp.dot(w4d_ref[...], h, preferred_element_type=jnp.float32) + b4d_ref[...]       # (1, T)
    sp = jnp.maximum(d, 0.0) + jnp.log1p(jnp.exp(-jnp.abs(d)))                            # softplus(d)
    o_ref[...] = jnp.concatenate([-sp, d - sp], axis=0)                                   # (2, T)


def _round_up(n, m):
    return ((n + m - 1) // m) * m


def _pick_tile(n, *, max_tile=4096, min_grid_steps=8):
    """Largest 128-aligned row tile <= max_tile that still leaves >= min_grid_steps
    grid steps (so the parallel axis can be split across v7x's two TensorCores)."""
    n128 = _round_up(max(n, 1), 128)
    tile = _round_up(pl.cdiv(n128, min_grid_steps), 128)
    return int(max(128, min(tile, max_tile, n128)))


def noise_filter_forward(x, params, *, tile_n=None, return_feature_major=False):
    """x: (N, INPUT_DIM) float32.  Returns (N, OUTPUT_DIM) log-probabilities
    (or the raw (2, n_pad) feature-major kernel output if return_feature_major)."""
    n = x.shape[0]

    # Single pass over the lane-padded (N,5) XLA layout: go feature-major once,
    # then stats / pad / kernel input all operate on the compact (5, N) layout.
    xt = x.astype(jnp.float32).T                                          # (5, N)

    # BatchNorm1d training-mode statistics (whole-batch mean, biased variance),
    # two-pass on the compact layout, folded into the first Linear.
    mean = jnp.mean(xt, axis=1, keepdims=True)                            # (5, 1)
    var = jnp.mean(jnp.square(xt - mean), axis=1, keepdims=True)          # (5, 1) biased
    scale = params["gamma"].reshape(-1, 1) * jax.lax.rsqrt(var + BN_EPS)  # (5, 1)
    shift = params["beta"].reshape(-1, 1) - mean * scale                  # (5, 1)

    w1 = params["w1"] * scale.T                                           # (64, 5)
    b1 = params["w1"] @ shift + params["b1"].reshape(-1, 1)               # (64, 1)

    # Class-difference row of the last Linear (only d = l1 - l0 is needed).
    w4d = params["w4"][1:2] - params["w4"][0:1]                           # (1, 16)
    b4d = (params["b4"][1:2] - params["b4"][0:1]).reshape(1, 1)           # (1, 1)

    tile = tile_n if tile_n is not None else _pick_tile(n)
    n_pad = _round_up(max(n, 1), tile)
    xt_pad = jnp.pad(xt, ((0, 0), (0, n_pad - n)))                        # (5, n_pad)

    def col(v):  # bias as (out, 1) column for broadcast in feature-major layout
        return v.reshape(-1, 1).astype(jnp.float32)

    operands = (
        xt_pad,
        w1.astype(jnp.float32), b1.astype(jnp.float32),
        params["w2"].astype(jnp.float32), col(params["b2"]),
        params["w3"].astype(jnp.float32), col(params["b3"]),
        w4d.astype(jnp.float32), b4d.astype(jnp.float32),
    )

    def const_spec(a):  # resident full block, never re-indexed
        return pl.BlockSpec(a.shape, lambda i: (0, 0))

    in_specs = [pl.BlockSpec((INPUT_DIM, tile), lambda i: (0, i))] + [
        const_spec(a) for a in operands[1:]
    ]

    flops = 2 * n_pad * (5 * 64 + 64 * 32 + 32 * 16 + 16 * 1)
    cost = pl.CostEstimate(
        flops=flops,
        transcendentals=2 * n_pad,
        bytes_accessed=4 * n_pad * (INPUT_DIM + OUTPUT_DIM)
        + 4 * sum(int(a.size) for a in operands[1:]),
    )

    out_t = pl.pallas_call(
        _noise_filter_kernel,
        out_shape=jax.ShapeDtypeStruct((OUTPUT_DIM, n_pad), jnp.float32),
        grid=(n_pad // tile,),
        in_specs=in_specs,
        out_specs=pl.BlockSpec((OUTPUT_DIM, tile), lambda i: (0, i)),
        compiler_params=pltpu.CompilerParams(
            dimension_semantics=("parallel",),
            vmem_limit_bytes=32 * 1024 * 1024,
            # Let XLA fuse the pad/transpose producer into the x input DMA.
            allow_input_fusion=[True] + [False] * (len(operands) - 1),
        ),
        cost_estimate=cost,
    )(*operands)

    if return_feature_major:
        # Lane-dense (2, n_pad) result for downstream consumers that can take it
        # feature-major; avoids materializing the lane-padded (N, 2) layout.
        return out_t
    return out_t[:, :n].T                                                 # (N, 2)


def noise_filter_reference(x, params):
    """Pure-JAX reference of the PyTorch module forward (for verification)."""
    x = x.astype(jnp.float32)
    mean = jnp.mean(x, axis=0)
    var = jnp.mean(jnp.square(x - mean), axis=0)
    h = (x - mean) * jax.lax.rsqrt(var + BN_EPS) * params["gamma"] + params["beta"]
    h = jnp.maximum(h @ params["w1"].T + params["b1"], 0.0)
    h = jnp.maximum(h @ params["w2"].T + params["b2"], 0.0)
    h = jnp.maximum(h @ params["w3"].T + params["b3"], 0.0)
    logits = h @ params["w4"].T + params["b4"]
    return jax.nn.log_softmax(logits, axis=-1)


def init_params(key):
    """Deterministic synthetic parameters matching the nn.Module shapes.

    Linear weights kept in PyTorch (out, in) layout; biases are (out,)."""
    dims = (INPUT_DIM,) + HIDDEN + (OUTPUT_DIM,)   # 5 -> 64 -> 32 -> 16 -> 2
    keys = jax.random.split(key, 2 * (len(dims) - 1))
    params = {
        "gamma": jnp.ones((INPUT_DIM,), jnp.float32),   # BatchNorm weight
        "beta": jnp.zeros((INPUT_DIM,), jnp.float32),   # BatchNorm bias
    }
    for i in range(len(dims) - 1):
        fan_in, fan_out = dims[i], dims[i + 1]
        bound = 1.0 / jnp.sqrt(jnp.float32(fan_in))
        params[f"w{i + 1}"] = jax.random.uniform(
            keys[2 * i], (fan_out, fan_in), jnp.float32, -bound, bound)
        params[f"b{i + 1}"] = jax.random.uniform(
            keys[2 * i + 1], (fan_out,), jnp.float32, -bound, bound)
    return params


if __name__ == "__main__":
    key = jax.random.PRNGKey(0)
    k_x, k_x2, k_p = jax.random.split(key, 3)
    params = init_params(k_p)

    # Small case (single grid step).
    N = 16
    x = jax.random.normal(k_x, (N, INPUT_DIM), jnp.float32)
    out = jax.block_until_ready(noise_filter_forward(x, params))
    assert out.shape == (N, OUTPUT_DIM)
    assert jnp.allclose(jnp.sum(jnp.exp(out), axis=-1), 1.0, atol=1e-5)
    ref = jax.block_until_ready(noise_filter_reference(x, params))
    assert jnp.allclose(out, ref, atol=1e-4, rtol=1e-4)

    # Non-multiple-of-tile case exercising a multi-step parallel grid + padding.
    N2 = 300
    x2 = jax.random.normal(k_x2, (N2, INPUT_DIM), jnp.float32)
    out2 = jax.block_until_ready(noise_filter_forward(x2, params))
    ref2 = jax.block_until_ready(noise_filter_reference(x2, params))
    assert out2.shape == (N2, OUTPUT_DIM)
    assert jnp.allclose(jnp.sum(jnp.exp(out2), axis=-1), 1.0, atol=1e-5)
    assert jnp.allclose(out2, ref2, atol=1e-4, rtol=1e-4)

    print("KERNEL_OK")
</pallas_src>

<mosaic_0001>
module attributes {stable_mosaic.version = 11 : i64} {
  func.func @_noise_filter_kernel(%arg0: i32, %arg1: memref<5x128xf32, #tpu.memory_space<vmem>>, %arg2: memref<64x5xf32, #tpu.memory_space<vmem>>, %arg3: memref<64x1xf32, #tpu.memory_space<vmem>>, %arg4: memref<32x64xf32, #tpu.memory_space<vmem>>, %arg5: memref<32x1xf32, #tpu.memory_space<vmem>>, %arg6: memref<16x32xf32, #tpu.memory_space<vmem>>, %arg7: memref<16x1xf32, #tpu.memory_space<vmem>>, %arg8: memref<1x16xf32, #tpu.memory_space<vmem>>, %arg9: memref<1x1xf32, #tpu.memory_space<vmem>>, %arg10: memref<2x128xf32, #tpu.memory_space<vmem>>) attributes {dimension_semantics = [#tpu.dimension_semantics<parallel>], iteration_bounds = array<i64: 1>, scalar_prefetch = 0 : i64, scratch_operands = 0 : i64, tpu.core_type = #tpu.core_type<tc>, window_params = [{transform_indices = @transform_0, window_bounds = array<i64: 5, 128>}, {pipeline_mode = #tpu.pipeline_mode<synchronous>, transform_indices = @transform_1, window_bounds = array<i64: 64, 5>}, {pipeline_mode = #tpu.pipeline_mode<synchronous>, transform_indices = @transform_2, window_bounds = array<i64: 64, 1>}, {pipeline_mode = #tpu.pipeline_mode<synchronous>, transform_indices = @transform_3, window_bounds = array<i64: 32, 64>}, {pipeline_mode = #tpu.pipeline_mode<synchronous>, transform_indices = @transform_4, window_bounds = array<i64: 32, 1>}, {pipeline_mode = #tpu.pipeline_mode<synchronous>, transform_indices = @transform_5, window_bounds = array<i64: 16, 32>}, {pipeline_mode = #tpu.pipeline_mode<synchronous>, transform_indices = @transform_6, window_bounds = array<i64: 16, 1>}, {pipeline_mode = #tpu.pipeline_mode<synchronous>, transform_indices = @transform_7, window_bounds = array<i64: 1, 16>}, {pipeline_mode = #tpu.pipeline_mode<synchronous>, transform_indices = @transform_8, window_bounds = array<i64: 1, 1>}, {transform_indices = @transform_9, window_bounds = array<i64: 2, 128>}]} {
    %c0 = arith.constant 0 : index
    %c0_0 = arith.constant 0 : index
    %0 = vector.load %arg1[%c0, %c0_0] : memref<5x128xf32, #tpu.memory_space<vmem>>, vector<5x128xf32>
    %c0_1 = arith.constant 0 : index
    %c0_2 = arith.constant 0 : index
    %1 = vector.load %arg2[%c0_1, %c0_2] : memref<64x5xf32, #tpu.memory_space<vmem>>, vector<64x5xf32>
    %cst = arith.constant dense<0.000000e+00> : vector<64x128xf32>
    %2 = tpu.matmul %1, %0, %cst {dimension_numbers = #tpu.dot_dimension_numbers<[1], [0], [0], [1], [0, 0, 1, 1], [], []>} : vector<64x5xf32>, vector<5x128xf32>, vector<64x128xf32> -> vector<64x128xf32>
    %c0_3 = arith.constant 0 : index
    %c0_4 = arith.constant 0 : index
    %3 = vector.load %arg3[%c0_3, %c0_4] : memref<64x1xf32, #tpu.memory_space<vmem>>, vector<64x1xf32>
    %4 = vector.broadcast %3 : vector<64x1xf32> to vector<64x128xf32>
    %5 = arith.addf %2, %4 : vector<64x128xf32>
    %cst_5 = arith.constant 0.000000e+00 : f32
    %6 = vector.broadcast %cst_5 : f32 to vector<64x128xf32>
    %7 = arith.maximumf %5, %6 : vector<64x128xf32>
    %c0_6 = arith.constant 0 : index
    %c0_7 = arith.constant 0 : index
    %8 = vector.load %arg4[%c0_6, %c0_7] : memref<32x64xf32, #tpu.memory_space<vmem>>, vector<32x64xf32>
    %cst_8 = arith.constant dense<0.000000e+00> : vector<32x128xf32>
    %9 = tpu.matmul %8, %7, %cst_8 {dimension_numbers = #tpu.dot_dimension_numbers<[1], [0], [0], [1], [0, 0, 1, 1], [], []>} : vector<32x64xf32>, vector<64x128xf32>, vector<32x128xf32> -> vector<32x128xf32>
    %c0_9 = arith.constant 0 : index
    %c0_10 = arith.constant 0 : index
    %10 = vector.load %arg5[%c0_9, %c0_10] : memref<32x1xf32, #tpu.memory_space<vmem>>, vector<32x1xf32>
    %11 = vector.broadcast %10 : vector<32x1xf32> to vector<32x128xf32>
    %12 = arith.addf %9, %11 : vector<32x128xf32>
    %cst_11 = arith.constant 0.000000e+00 : f32
    %13 = vector.broadcast %cst_11 : f32 to vector<32x128xf32>
    %14 = arith.maximumf %12, %13 : vector<32x128xf32>
    %c0_12 = arith.constant 0 : index
    %c0_13 = arith.constant 0 : index
    %15 = vector.load %arg6[%c0_12, %c0_13] : memref<16x32xf32, #tpu.memory_space<vmem>>, vector<16x32xf32>
    %cst_14 = arith.constant dense<0.000000e+00> : vector<16x128xf32>
    %16 = tpu.matmul %15, %14, %cst_14 {dimension_numbers = #tpu.dot_dimension_numbers<[1], [0], [0], [1], [0, 0, 1, 1], [], []>} : vector<16x32xf32>, vector<32x128xf32>, vector<16x128xf32> -> vector<16x128xf32>
    %c0_15 = arith.constant 0 : index
    %c0_16 = arith.constant 0 : index
    %17 = vector.load %arg7[%c0_15, %c0_16] : memref<16x1xf32, #tpu.memory_space<vmem>>, vector<16x1xf32>
    %18 = vector.broadcast %17 : vector<16x1xf32> to vector<16x128xf32>
    %19 = arith.addf %16, %18 : vector<16x128xf32>
    %cst_17 = arith.constant 0.000000e+00 : f32
    %20 = vector.broadcast %cst_17 : f32 to vector<16x128xf32>
    %21 = arith.maximumf %19, %20 : vector<16x128xf32>
    %c0_18 = arith.constant 0 : index
    %c0_19 = arith.constant 0 : index
    %22 = vector.load %arg8[%c0_18, %c0_19] : memref<1x16xf32, #tpu.memory_space<vmem>>, vector<1x16xf32>
    %cst_20 = arith.constant dense<0.000000e+00> : vector<1x128xf32>
    %23 = tpu.matmul %22, %21, %cst_20 {dimension_numbers = #tpu.dot_dimension_numbers<[1], [0], [0], [1], [0, 0, 1, 1], [], []>} : vector<1x16xf32>, vector<16x128xf32>, vector<1x128xf32> -> vector<1x128xf32>
    %c0_21 = arith.constant 0 : index
    %c0_22 = arith.constant 0 : index
    %24 = vector.load %arg9[%c0_21, %c0_22] : memref<1x1xf32, #tpu.memory_space<vmem>>, vector<1x1xf32>
    %25 = vector.broadcast %24 : vector<1x1xf32> to vector<1x128xf32>
    %26 = arith.addf %23, %25 : vector<1x128xf32>
    %cst_23 = arith.constant 0.000000e+00 : f32
    %27 = vector.broadcast %cst_23 : f32 to vector<1x128xf32>
    %28 = arith.maximumf %26, %27 : vector<1x128xf32>
    %29 = math.absf %26 : vector<1x128xf32>
    %cst_24 = arith.constant 0.000000e+00 : f32
    %30 = vector.broadcast %cst_24 : f32 to vector<1x128xf32>
    %31 = arith.subf %30, %29 : vector<1x128xf32>
    %32 = math.exp %31 : vector<1x128xf32>
    %33 = math.log1p %32 : vector<1x128xf32>
    %34 = arith.addf %28, %33 : vector<1x128xf32>
    %cst_25 = arith.constant 0.000000e+00 : f32
    %35 = vector.broadcast %cst_25 : f32 to vector<1x128xf32>
    %36 = arith.subf %35, %34 : vector<1x128xf32>
    %37 = arith.subf %26, %34 : vector<1x128xf32>
    %38 = tpu.concatenate %36, %37 in 0 : vector<1x128xf32>, vector<1x128xf32> -> vector<2x128xf32>
    %c0_26 = arith.constant 0 : index
    %c0_27 = arith.constant 0 : index
    %39 = vector.load %arg10[%c0_26, %c0_27] : memref<2x128xf32, #tpu.memory_space<vmem>>, vector<2x128xf32>
    tpu.vector_store %arg10[%c0_26, %c0_27], %38 {strides = array<i32>} : memref<2x128xf32, #tpu.memory_space<vmem>>, vector<2x128xf32>,
    return
  }
  func.func @transform_0(%arg0: i32) -> (i32, i32) {
    %c0_i32 = arith.constant 0 : i32
    %c0_i32_0 = arith.constant 0 : i32
    return %c0_i32, %arg0 : i32, i32
  }
  func.func @transform_1(%arg0: i32) -> (i32, i32) {
    %c0_i32 = arith.constant 0 : i32
    %c0_i32_0 = arith.constant 0 : i32
    %c0_i32_1 = arith.constant 0 : i32
    return %c0_i32, %c0_i32_0 : i32, i32
  }
  func.func @transform_2(%arg0: i32) -> (i32, i32) {
    %c0_i32 = arith.constant 0 : i32
    %c0_i32_0 = arith.constant 0 : i32
    %c0_i32_1 = arith.constant 0 : i32
    return %c0_i32, %c0_i32_0 : i32, i32
  }
  func.func @transform_3(%arg0: i32) -> (i32, i32) {
    %c0_i32 = arith.constant 0 : i32
    %c0_i32_0 = arith.constant 0 : i32
    %c0_i32_1 = arith.constant 0 : i32
    return %c0_i32, %c0_i32_0 : i32, i32
  }
  func.func @transform_4(%arg0: i32) -> (i32, i32) {
    %c0_i32 = arith.constant 0 : i32
    %c0_i32_0 = arith.constant 0 : i32
    %c0_i32_1 = arith.constant 0 : i32
    return %c0_i32, %c0_i32_0 : i32, i32
  }
  func.func @transform_5(%arg0: i32) -> (i32, i32) {
    %c0_i32 = arith.constant 0 : i32
    %c0_i32_0 = arith.constant 0 : i32
    %c0_i32_1 = arith.constant 0 : i32
    return %c0_i32, %c0_i32_0 : i32, i32
  }
  func.func @transform_6(%arg0: i32) -> (i32, i32) {
    %c0_i32 = arith.constant 0 : i32
    %c0_i32_0 = arith.constant 0 : i32
    %c0_i32_1 = arith.constant 0 : i32
    return %c0_i32, %c0_i32_0 : i32, i32
  }
  func.func @transform_7(%arg0: i32) -> (i32, i32) {
    %c0_i32 = arith.constant 0 : i32
    %c0_i32_0 = arith.constant 0 : i32
    %c0_i32_1 = arith.constant 0 : i32
    return %c0_i32, %c0_i32_0 : i32, i32
  }
  func.func @transform_8(%arg0: i32) -> (i32, i32) {
    %c0_i32 = arith.constant 0 : i32
    %c0_i32_0 = arith.constant 0 : i32
    %c0_i32_1 = arith.constant 0 : i32
    return %c0_i32, %c0_i32_0 : i32, i32
  }
  func.func @transform_9(%arg0: i32) -> (i32, i32) {
    %c0_i32 = arith.constant 0 : i32
    %c0_i32_0 = arith.constant 0 : i32
    return %c0_i32, %arg0 : i32, i32
  }
}

</mosaic_0001>

<llo_original>
// kernel: tpu_custom_call.1
$region0: #{tpu_custom_call.1}
  #allocation0 [shape = 'u32[]', space=smem, size = 0x4, offset = 0x4, fixed_abs, tag = 'smem constant byte address 0x4 - core index']
  #allocation1 [shape = 'u32[144,128]{1,0:T(1,128)}', space=vmem, size = 0x12000, scoped, tag = 'internal scratch']
  #allocation2 [shape = 'f32[1,1]{1,0:T(1,128)S(1)}', space=vmem, size = 0x200, scoped, tag = 'scoped memory for tpu_custom_call.1']
  %s0 = inlined_call_operand.vmem [shape: f32[5,128], index: 0, kind: input, shape index: {}]
  %s1 = inlined_call_operand.vmem [shape: f32[64,5], index: 1, kind: input, shape index: {}]
  %s2 = inlined_call_operand.vmem [shape: f32[64,1], index: 2, kind: input, shape index: {}]
  %s3 = inlined_call_operand.vmem [shape: f32[32,64], index: 3, kind: input, shape index: {}]
  %s4 = inlined_call_operand.vmem [shape: f32[32,1], index: 4, kind: input, shape index: {}]
  %s5 = inlined_call_operand.vmem [shape: f32[16,32], index: 5, kind: input, shape index: {}]
  %s6 = inlined_call_operand.vmem [shape: f32[16,1], index: 6, kind: input, shape index: {}]
  %s7 = inlined_call_operand.vmem [shape: f32[1,16], index: 7, kind: input, shape index: {}]
  %s8 = inlined_call_operand.<no memory space> [shape: f32[1,1], index: 8, kind: input, shape index: {}]
  %s9 = inlined_call_operand.hbm [shape: f32[2,128], index: 9, kind: output, shape index: {}]
  %s10 = sld [smem:[#allocation0]]
  $region46: #{tpu_custom_call.1} parent=0
    _
  %s12 = ssub.s32 1, %s10
  %s13 = scalar_select 0, %s12, %s10
  %v14 = vstv %s8
  %15 = vst [vmem:[#allocation2] sm:$0x1] %v14
  $region1: #{tpu_custom_call.1} parent=0
    #allocation3 [shape = 'u8[1024]{0}', space=vmem, size = 0x400, scoped, tag = 'output window, operand 0, single buffered']
    #allocation4 [shape = 's32[1]{0}', space=sflag, size = 0x4, scoped, tag = 'scoped memory for tpu_custom_call.1']
    %16 = vsyncpa [#allocation4], 0
    // Predicated region
    $region2: #{tpu_custom_call.1} parent=1 // pred_check
      _
    $region3: #{tpu_custom_call.1} parent=1 // pred_check_branch
      %18 = sbr.rel (0) target = $region5
    $region4: #{tpu_custom_call.1} parent=1 // pred_region
      _
    $region5: #{tpu_custom_call.1} parent=1 // pred_fallthru
      _
    // Predicated region
    $region6: #{tpu_custom_call.1} parent=1 // pred_check
      _
    $region7: #{tpu_custom_call.1} parent=1 // pred_check_branch
      %20 = sbr.rel (0) target = $region9
    $region8: #{tpu_custom_call.1} parent=1 // pred_region
      _
    $region9: #{tpu_custom_call.1} parent=1 // pred_fallthru
      _
    // Predicated region
    $region10: #{tpu_custom_call.1} parent=1 // pred_check
      _
    $region11: #{tpu_custom_call.1} parent=1 // pred_check_branch
      %22 = sbr.rel (0) target = $region13
    $region12: #{tpu_custom_call.1} parent=1 // pred_region
      _
    $region13: #{tpu_custom_call.1} parent=1 // pred_fallthru
      _
    // Predicated region
    $region14: #{tpu_custom_call.1} parent=1 // pred_check
      _
    $region15: #{tpu_custom_call.1} parent=1 // pred_check_branch
      %24 = sbr.rel (0) target = $region17
    $region16: #{tpu_custom_call.1} parent=1 // pred_region
      _
    $region17: #{tpu_custom_call.1} parent=1 // pred_fallthru
      _
    // Predicated region
    $region18: #{tpu_custom_call.1} parent=1 // pred_check
      _
    $region19: #{tpu_custom_call.1} parent=1 // pred_check_branch
      %26 = sbr.rel (0) target = $region21
    $region20: #{tpu_custom_call.1} parent=1 // pred_region
      _
    $region21: #{tpu_custom_call.1} parent=1 // pred_fallthru
      _
    // Predicated region
    $region22: #{tpu_custom_call.1} parent=1 // pred_check
      _
    $region23: #{tpu_custom_call.1} parent=1 // pred_check_branch
      %28 = sbr.rel (0) target = $region25
    $region24: #{tpu_custom_call.1} parent=1 // pred_region
      _
    $region25: #{tpu_custom_call.1} parent=1 // pred_fallthru
      _
    // Predicated region
    $region26: #{tpu_custom_call.1} parent=1 // pred_check
      _
    $region27: #{tpu_custom_call.1} parent=1 // pred_check_branch
      %30 = sbr.rel (0) target = $region29
    $region28: #{tpu_custom_call.1} parent=1 // pred_region
      _
    $region29: #{tpu_custom_call.1} parent=1 // pred_fallthru
      _
    // Predicated region
    $region30: #{tpu_custom_call.1} parent=1 // pred_check
      _
    $region31: #{tpu_custom_call.1} parent=1 // pred_check_branch
      %32 = sbr.rel (0) target = $region33
    $region32: #{tpu_custom_call.1} parent=1 // pred_region
      _
    $region33: #{tpu_custom_call.1} parent=1 // pred_fallthru
      _
    // Predicated region
    $region34: #{tpu_custom_call.1} parent=1 // pred_check
      _
    $region35: #{tpu_custom_call.1} parent=1 // pred_check_branch
      %34 = sbr.rel (0) target = $region37
    $region36: #{tpu_custom_call.1} parent=1 // pred_region
      _
    $region37: #{tpu_custom_call.1} parent=1 // pred_fallthru
      _
    %v35 = vld [vmem:[%s0] sm:$0x1f]
    %v36 = vld [vmem:[%s1] sm:$0xff]
    %v37 = vld [vmem:[%s1 + $0x8] sm:$0xff]
    %v38 = vld [vmem:[%s1 + $0x10] sm:$0xff]
    %v39 = vld [vmem:[%s1 + $0x18] sm:$0xff]
    %v40 = vld [vmem:[%s1 + $0x20] sm:$0xff]
    %v41 = vld [vmem:[%s1 + $0x28] sm:$0xff]
    %v42 = vld [vmem:[%s1 + $0x30] sm:$0xff]
    %v43 = vld [vmem:[%s1 + $0x38] sm:$0xff]
    %v44 = vld [vmem:[%s2] sm:$0xff]
    %v45 = vld [vmem:[%s2 + $0x8] sm:$0xff]
    %v46 = vld [vmem:[%s2 + $0x10] sm:$0xff]
    %v47 = vld [vmem:[%s2 + $0x18] sm:$0xff]
    %v48 = vld [vmem:[%s2 + $0x20] sm:$0xff]
    %v49 = vld [vmem:[%s2 + $0x28] sm:$0xff]
    %v50 = vld [vmem:[%s2 + $0x30] sm:$0xff]
    %v51 = vld [vmem:[%s2 + $0x38] sm:$0xff]
    %53 = vset.pattern.permute.xlu0 0
    %54 = vperm.xlu0 %53, %v44
    %v55 = vpop.permute.xlu0 %54
    %58 = vset.pattern.permute.xlu0 0
    %59 = vperm.xlu0 %58, %v45
    %v60 = vpop.permute.xlu0 %59
    %63 = vset.pattern.permute.xlu0 0
    %64 = vperm.xlu0 %63, %v46
    %v65 = vpop.permute.xlu0 %64
    %68 = vset.pattern.permute.xlu0 0
    %69 = vperm.xlu0 %68, %v47
    %v70 = vpop.permute.xlu0 %69
    %73 = vset.pattern.permute.xlu0 0
    %74 = vperm.xlu0 %73, %v48
    %v75 = vpop.permute.xlu0 %74
    %78 = vset.pattern.permute.xlu0 0
    %79 = vperm.xlu0 %78, %v49
    %v80 = vpop.permute.xlu0 %79
    %83 = vset.pattern.permute.xlu0 0
    %84 = vperm.xlu0 %83, %v50
    %v85 = vpop.permute.xlu0 %84
    %88 = vset.pattern.permute.xlu0 0
    %89 = vperm.xlu0 %88, %v51
    %v90 = vpop.permute.xlu0 %89
    %vm92 = vcmask 39936
    %v94 = vsel %vm92, %v36, 0
    %v97 = vsel %vm92, %v37, 0
    %v100 = vsel %vm92, %v38, 0
    %v103 = vsel %vm92, %v39, 0
    %v106 = vsel %vm92, %v40, 0
    %v109 = vsel %vm92, %v41, 0
    %v112 = vsel %vm92, %v42, 0
    %v115 = vsel %vm92, %v43, 0
    %vm117 = vcmask 1044480
    %v119 = vsel %vm117, %v35, 0
    %121 = vmatprep.subr.mxu0 0.0
    %122 = vmatpush1.msra.mxu0 %v119
    %123 = vmatprep.subr.mxu0 0.0
    %124 = vmatpush1.msra.mxu0 0.0
    %125 = vmatprep.subr.mxu0 0.0
    %126 = vmatpush1.msra.mxu0 0.0
    %127 = vmatprep.subr.mxu0 0.0
    %128 = vmatpush1.msra.mxu0 0.0
    %129 = vmatprep.subr.mxu0 0.0
    %130 = vmatpush1.msra.mxu0 0.0
    %131 = vmatprep.subr.mxu0 0.0
    %132 = vmatpush1.msra.mxu0 0.0
    %133 = vmatprep.subr.mxu0 0.0
    %134 = vmatpush1.msra.mxu0 0.0
    %135 = vmatprep.subr.mxu0 0.0
    %136 = vmatpush1.msra.mxu0 0.0
    %137 = vmatprep.subr.mxu0 0.0
    %138 = vmatpush1.msra.mxu0 0.0
    %139 = vmatprep.subr.mxu0 0.0
    %140 = vmatpush1.msra.mxu0 0.0
    %141 = vmatprep.subr.mxu0 0.0
    %142 = vmatpush1.msra.mxu0 0.0
    %143 = vmatprep.subr.mxu0 0.0
    %144 = vmatpush1.msra.mxu0 0.0
    %145 = vmatprep.subr.mxu0 0.0
    %146 = vmatpush1.msra.mxu0 0.0
    %147 = vmatprep.subr.mxu0 0.0
    %148 = vmatpush1.msra.mxu0 0.0
    %149 = vmatprep.subr.mxu0 0.0
    %150 = vmatpush1.msra.mxu0 0.0
    %151 = vmatprep.subr.mxu0 0.0
    %152 = vmatpush1.msra.mxu0 0.0
    %153 = vmatprep.subr.mxu0 0.0
    %154 = vmatpush1.msra.mxu0 0.0
    %155 = vmatprep.subr.mxu0 0.0
    %156 = vmatpush1.msra.mxu0 0.0
    %157 = vmatprep.subr.mxu0 0.0
    %158 = vmatpush1.msra.mxu0 0.0
    %159 = vmatprep.subr.mxu0 0.0
    %160 = vmatpush1.msra.mxu0 0.0
    %161 = vmatprep.subr.mxu0 0.0
    %162 = vmatpush1.msra.mxu0 0.0
    %163 = vmatprep.subr.mxu0 0.0
    %164 = vmatpush1.msra.mxu0 0.0
    %165 = vmatprep.subr.mxu0 0.0
    %166 = vmatpush1.msra.mxu0 0.0
    %167 = vmatprep.subr.mxu0 0.0
    %168 = vmatpush1.msra.mxu0 0.0
    %169 = vmatprep.subr.mxu0 0.0
    %170 = vmatpush1.msra.mxu0 0.0
    %171 = vmatprep.subr.mxu0 0.0
    %172 = vmatpush1.msra.mxu0 0.0
    %173 = vmatprep.subr.mxu0 0.0
    %174 = vmatpush1.msra.mxu0 0.0
    %175 = vmatprep.subr.mxu0 0.0
    %176 = vmatpush1.msra.mxu0 0.0
    %177 = vmatprep.subr.mxu0 0.0
    %178 = vmatpush1.msra.mxu0 0.0
    %179 = vmatprep.subr.mxu0 0.0
    %180 = vmatpush1.msra.mxu0 0.0
    %181 = vmatprep.subr.mxu0 0.0
    %182 = vmatpush1.msra.mxu0 0.0
    %183 = vmatprep.subr.mxu0 0.0
    %184 = vmatpush1.msra.mxu0 0.0
    %185 = vmatprep.mubr.f32.mxu0 0.0
    %186 = vmatmul.mubr.f32.gmra.mrb[0].mxu0 %v94
    %v187 = vpop.f32.mrb[0].mxu0
    %v188 = vadd.f32 %v55, %v187
    %v189 = vpop.f32.mrb[0].mxu0
    %190 = vmatprep.mubr.f32.mxu0 0.0
    %191 = vmatmul.mubr.f32.gmra.mrb[0].mxu0 %v97
    %v192 = vpop.f32.mrb[0].mxu0
    %v193 = vadd.f32 %v60, %v192
    %v194 = vpop.f32.mrb[0].mxu0
    %195 = vmatprep.mubr.f32.mxu0 0.0
    %196 = vmatmul.mubr.f32.gmra.mrb[0].mxu0 %v100
    %v197 = vpop.f32.mrb[0].mxu0
    %v198 = vadd.f32 %v65, %v197
    %v199 = vpop.f32.mrb[0].mxu0
    %200 = vmatprep.mubr.f32.mxu0 0.0
    %201 = vmatmul.mubr.f32.gmra.mrb[0].mxu0 %v103
    %v202 = vpop.f32.mrb[0].mxu0
    %v203 = vadd.f32 %v70, %v202
    %v204 = vpop.f32.mrb[0].mxu0
    %205 = vmatprep.mubr.f32.mxu0 0.0
    %206 = vmatmul.mubr.f32.gmra.mrb[0].mxu0 %v106
    %v207 = vpop.f32.mrb[0].mxu0
    %v208 = vadd.f32 %v75, %v207
    %v209 = vpop.f32.mrb[0].mxu0
    %210 = vmatprep.mubr.f32.mxu0 0.0
    %211 = vmatmul.mubr.f32.gmra.mrb[0].mxu0 %v109
    %v212 = vpop.f32.mrb[0].mxu0
    %v213 = vadd.f32 %v80, %v212
    %v214 = vpop.f32.mrb[0].mxu0
    %215 = vmatprep.mubr.f32.mxu0 0.0
    %216 = vmatmul.mubr.f32.gmra.mrb[0].mxu0 %v112
    %v217 = vpop.f32.mrb[0].mxu0
    %v218 = vadd.f32 %v85, %v217
    %v219 = vpop.f32.mrb[0].mxu0
    %220 = vmatprep.mubr.f32.mxu0 0.0
    %221 = vmatmul.mubr.f32.gmra.mrb[0].mxu0 %v115
    %v222 = vpop.f32.mrb[0].mxu0
    %v223 = vadd.f32 %v90, %v222
    %v224 = vpop.f32.mrb[0].mxu0
    %225 = vdwg.mxu0
    %v226 = vmax.f32 %v188, 0.0
    %v227 = vmax.f32 %v193, 0.0
    %v228 = vmax.f32 %v198, 0.0
    %v229 = vmax.f32 %v203, 0.0
    %v230 = vmax.f32 %v208, 0.0
    %v231 = vmax.f32 %v213, 0.0
    %v232 = vmax.f32 %v218, 0.0
    %v233 = vmax.f32 %v223, 0.0
    %v234 = vld [vmem:[%s3] sm:$0xff]
    %v235 = vld [vmem:[%s3 + $0x8] sm:$0xff]
    %v236 = vld [vmem:[%s3 + $0x10] sm:$0xff]
    %v237 = vld [vmem:[%s3 + $0x18] sm:$0xff]
    %v238 = vld [vmem:[%s4] sm:$0xff]
    %v239 = vld [vmem:[%s4 + $0x8] sm:$0xff]
    %v240 = vld [vmem:[%s4 + $0x10] sm:$0xff]
    %v241 = vld [vmem:[%s4 + $0x18] sm:$0xff]
    %243 = vset.pattern.permute.xlu0 0
    %244 = vperm.xlu0 %243, %v238
    %v245 = vpop.permute.xlu0 %244
    %248 = vset.pattern.permute.xlu0 0
    %249 = vperm.xlu0 %248, %v239
    %v250 = vpop.permute.xlu0 %249
    %253 = vset.pattern.permute.xlu0 0
    %254 = vperm.xlu0 %253, %v240
    %v255 = vpop.permute.xlu0 %254
    %258 = vset.pattern.permute.xlu0 0
    %259 = vperm.xlu0 %258, %v241
    %v260 = vpop.permute.xlu0 %259
    %vm262 = vcmask 523264
    %v264 = vsel %vm262, %v234, 0
    %v267 = vsel %vm262, %v235, 0
    %v270 = vsel %vm262, %v236, 0
    %v273 = vsel %vm262, %v237, 0
    %275 = vmatprep.subr.mxu0 0.0
    %276 = vmatpush1.msra.mxu0 %v226
    %277 = vmatprep.subr.mxu0 0.0
    %278 = vmatpush1.msra.mxu0 %v227
    %279 = vmatprep.subr.mxu0 0.0
    %280 = vmatpush1.msra.mxu0 %v228
    %281 = vmatprep.subr.mxu0 0.0
    %282 = vmatpush1.msra.mxu0 %v229
    %283 = vmatprep.subr.mxu0 0.0
    %284 = vmatpush1.msra.mxu0 %v230
    %285 = vmatprep.subr.mxu0 0.0
    %286 = vmatpush1.msra.mxu0 %v231
    %287 = vmatprep.subr.mxu0 0.0
    %288 = vmatpush1.msra.mxu0 %v232
    %289 = vmatprep.subr.mxu0 0.0
    %290 = vmatpush1.msra.mxu0 %v233
    %291 = vmatprep.subr.mxu0 0.0
    %292 = vmatpush1.msra.mxu0 0.0
    %293 = vmatprep.subr.mxu0 0.0
    %294 = vmatpush1.msra.mxu0 0.0
    %295 = vmatprep.subr.mxu0 0.0
    %296 = vmatpush1.msra.mxu0 0.0
    %297 = vmatprep.subr.mxu0 0.0
    %298 = vmatpush1.msra.mxu0 0.0
    %299 = vmatprep.subr.mxu0 0.0
    %300 = vmatpush1.msra.mxu0 0.0
    %301 = vmatprep.subr.mxu0 0.0
    %302 = vmatpush1.msra.mxu0 0.0
    %303 = vmatprep.subr.mxu0 0.0
    %304 = vmatpush1.msra.mxu0 0.0
    %305 = vmatprep.subr.mxu0 0.0
    %306 = vmatpush1.msra.mxu0 0.0
    %307 = vmatprep.subr.mxu0 0.0
    %308 = vmatpush1.msra.mxu0 0.0
    %309 = vmatprep.subr.mxu0 0.0
    %310 = vmatpush1.msra.mxu0 0.0
    %311 = vmatprep.subr.mxu0 0.0
    %312 = vmatpush1.msra.mxu0 0.0
    %313 = vmatprep.subr.mxu0 0.0
    %314 = vmatpush1.msra.mxu0 0.0
    %315 = vmatprep.subr.mxu0 0.0
    %316 = vmatpush1.msra.mxu0 0.0
    %317 = vmatprep.subr.mxu0 0.0
    %318 = vmatpush1.msra.mxu0 0.0
    %319 = vmatprep.subr.mxu0 0.0
    %320 = vmatpush1.msra.mxu0 0.0
    %321 = vmatprep.subr.mxu0 0.0
    %322 = vmatpush1.msra.mxu0 0.0
    %323 = vmatprep.subr.mxu0 0.0
    %324 = vmatpush1.msra.mxu0 0.0
    %325 = vmatprep.subr.mxu0 0.0
    %326 = vmatpush1.msra.mxu0 0.0
    %327 = vmatprep.subr.mxu0 0.0
    %328 = vmatpush1.msra.mxu0 0.0
    %329 = vmatprep.subr.mxu0 0.0
    %330 = vmatpush1.msra.mxu0 0.0
    %331 = vmatprep.subr.mxu0 0.0
    %332 = vmatpush1.msra.mxu0 0.0
    %333 = vmatprep.subr.mxu0 0.0
    %334 = vmatpush1.msra.mxu0 0.0
    %335 = vmatprep.subr.mxu0 0.0
    %336 = vmatpush1.msra.mxu0 0.0
    %337 = vmatprep.subr.mxu0 0.0
    %338 = vmatpush1.msra.mxu0 0.0
    %339 = vmatprep.mubr.f32.mxu0 0.0
    %340 = vmatmul.mubr.f32.gmra.mrb[0].mxu0 %v264
    %v341 = vpop.f32.mrb[0].mxu0
    %v342 = vadd.f32 %v245, %v341
    %v343 = vpop.f32.mrb[0].mxu0
    %344 = vmatprep.mubr.f32.mxu0 0.0
    %345 = vmatmul.mubr.f32.gmra.mrb[0].mxu0 %v267
    %v346 = vpop.f32.mrb[0].mxu0
    %v347 = vadd.f32 %v250, %v346
    %v348 = vpop.f32.mrb[0].mxu0
    %349 = vmatprep.mubr.f32.mxu0 0.0
    %350 = vmatmul.mubr.f32.gmra.mrb[0].mxu0 %v270
    %v351 = vpop.f32.mrb[0].mxu0
    %v352 = vadd.f32 %v255, %v351
    %v353 = vpop.f32.mrb[0].mxu0
    %354 = vmatprep.mubr.f32.mxu0 0.0
    %355 = vmatmul.mubr.f32.gmra.mrb[0].mxu0 %v273
    %v356 = vpop.f32.mrb[0].mxu0
    %v357 = vadd.f32 %v260, %v356
    %v358 = vpop.f32.mrb[0].mxu0
    %359 = vdwg.mxu0
    %v360 = vmax.f32 %v342, 0.0
    %v361 = vmax.f32 %v347, 0.0
    %v362 = vmax.f32 %v352, 0.0
    %v363 = vmax.f32 %v357, 0.0
    %v364 = vld [vmem:[%s5] sm:$0xff]
    %v365 = vld [vmem:[%s5 + $0x8] sm:$0xff]
    %v366 = vld [vmem:[%s6] sm:$0xff]
    %v367 = vld [vmem:[%s6 + $0x8] sm:$0xff]
    %369 = vset.pattern.permute.xlu0 0
    %370 = vperm.xlu0 %369, %v366
    %v371 = vpop.permute.xlu0 %370
    %374 = vset.pattern.permute.xlu0 0
    %375 = vperm.xlu0 %374, %v367
    %v376 = vpop.permute.xlu0 %375
    %vm378 = vcmask 261120
    %v380 = vsel %vm378, %v364, 0
    %v383 = vsel %vm378, %v365, 0
    %385 = vmatprep.subr.mxu0 0.0
    %386 = vmatpush1.msra.mxu0 %v360
    %387 = vmatprep.subr.mxu0 0.0
    %388 = vmatpush1.msra.mxu0 %v361
    %389 = vmatprep.subr.mxu0 0.0
    %390 = vmatpush1.msra.mxu0 %v362
    %391 = vmatprep.subr.mxu0 0.0
    %392 = vmatpush1.msra.mxu0 %v363
    %393 = vmatprep.subr.mxu0 0.0
    %394 = vmatpush1.msra.mxu0 0.0
    %395 = vmatprep.subr.mxu0 0.0
    %396 = vmatpush1.msra.mxu0 0.0
    %397 = vmatprep.subr.mxu0 0.0
    %398 = vmatpush1.msra.mxu0 0.0
    %399 = vmatprep.subr.mxu0 0.0
    %400 = vmatpush1.msra.mxu0 0.0
    %401 = vmatprep.subr.mxu0 0.0
    %402 = vmatpush1.msra.mxu0 0.0
    %403 = vmatprep.subr.mxu0 0.0
    %404 = vmatpush1.msra.mxu0 0.0
    %405 = vmatprep.subr.mxu0 0.0
    %406 = vmatpush1.msra.mxu0 0.0
    %407 = vmatprep.subr.mxu0 0.0
    %408 = vmatpush1.msra.mxu0 0.0
    %409 = vmatprep.subr.mxu0 0.0
    %410 = vmatpush1.msra.mxu0 0.0
    %411 = vmatprep.subr.mxu0 0.0
    %412 = vmatpush1.msra.mxu0 0.0
    %413 = vmatprep.subr.mxu0 0.0
    %414 = vmatpush1.msra.mxu0 0.0
    %415 = vmatprep.subr.mxu0 0.0
    %416 = vmatpush1.msra.mxu0 0.0
    %417 = vmatprep.subr.mxu0 0.0
    %418 = vmatpush1.msra.mxu0 0.0
    %419 = vmatprep.subr.mxu0 0.0
    %420 = vmatpush1.msra.mxu0 0.0
    %421 = vmatprep.subr.mxu0 0.0
    %422 = vmatpush1.msra.mxu0 0.0
    %423 = vmatprep.subr.mxu0 0.0
    %424 = vmatpush1.msra.mxu0 0.0
    %425 = vmatprep.subr.mxu0 0.0
    %426 = vmatpush1.msra.mxu0 0.0
    %427 = vmatprep.subr.mxu0 0.0
    %428 = vmatpush1.msra.mxu0 0.0
    %429 = vmatprep.subr.mxu0 0.0
    %430 = vmatpush1.msra.mxu0 0.0
    %431 = vmatprep.subr.mxu0 0.0
    %432 = vmatpush1.msra.mxu0 0.0
    %433 = vmatprep.subr.mxu0 0.0
    %434 = vmatpush1.msra.mxu0 0.0
    %435 = vmatprep.subr.mxu0 0.0
    %436 = vmatpush1.msra.mxu0 0.0
    %437 = vmatprep.subr.mxu0 0.0
    %438 = vmatpush1.msra.mxu0 0.0
    %439 = vmatprep.subr.mxu0 0.0
    %440 = vmatpush1.msra.mxu0 0.0
    %441 = vmatprep.subr.mxu0 0.0
    %442 = vmatpush1.msra.mxu0 0.0
    %443 = vmatprep.subr.mxu0 0.0
    %444 = vmatpush1.msra.mxu0 0.0
    %445 = vmatprep.subr.mxu0 0.0
    %446 = vmatpush1.msra.mxu0 0.0
    %447 = vmatprep.subr.mxu0 0.0
    %448 = vmatpush1.msra.mxu0 0.0
    %449 = vmatprep.mubr.f32.mxu0 0.0
    %450 = vmatmul.mubr.f32.gmra.mrb[0].mxu0 %v380
    %v451 = vpop.f32.mrb[0].mxu0
    %v452 = vadd.f32 %v371, %v451
    %v453 = vpop.f32.mrb[0].mxu0
    %454 = vmatprep.mubr.f32.mxu0 0.0
    %455 = vmatmul.mubr.f32.gmra.mrb[0].mxu0 %v383
    %v456 = vpop.f32.mrb[0].mxu0
    %v457 = vadd.f32 %v376, %v456
    %v458 = vpop.f32.mrb[0].mxu0
    %459 = vdwg.mxu0
    %v460 = vmax.f32 %v452, 0.0
    %v461 = vmax.f32 %v457, 0.0
    %v462 = vld [vmem:[%s7] sm:$0x1]
    %v463 = vld [vmem:[#allocation2] sm:$0x1]
    %465 = vset.pattern.permute.xlu0 0
    %466 = vperm.xlu0 %465, %v463
    %v467 = vpop.permute.xlu0 %466
    %v469 = vlaneseq
    %v470 = vshrl.u32 %v469, 7
    %v471 = vsub.s32 0, %v470
    %v472 = vrot.slane %v467, %v471
    %vm473 = vcmask 130048
    %v475 = vsel %vm473, %v462, 0
    %477 = vmatprep.subr.mxu0 0.0
    %478 = vmatpush1.msra.mxu0 %v460
    %479 = vmatprep.subr.mxu0 0.0
    %480 = vmatpush1.msra.mxu0 %v461
    %481 = vmatprep.subr.mxu0 0.0
    %482 = vmatpush1.msra.mxu0 0.0
    %483 = vmatprep.subr.mxu0 0.0
    %484 = vmatpush1.msra.mxu0 0.0
    %485 = vmatprep.subr.mxu0 0.0
    %486 = vmatpush1.msra.mxu0 0.0
    %487 = vmatprep.subr.mxu0 0.0
    %488 = vmatpush1.msra.mxu0 0.0
    %489 = vmatprep.subr.mxu0 0.0
    %490 = vmatpush1.msra.mxu0 0.0
    %491 = vmatprep.subr.mxu0 0.0
    %492 = vmatpush1.msra.mxu0 0.0
    %493 = vmatprep.subr.mxu0 0.0
    %494 = vmatpush1.msra.mxu0 0.0
    %495 = vmatprep.subr.mxu0 0.0
    %496 = vmatpush1.msra.mxu0 0.0
    %497 = vmatprep.subr.mxu0 0.0
    %498 = vmatpush1.msra.mxu0 0.0
    %499 = vmatprep.subr.mxu0 0.0
    %500 = vmatpush1.msra.mxu0 0.0
    %501 = vmatprep.subr.mxu0 0.0
    %502 = vmatpush1.msra.mxu0 0.0
    %503 = vmatprep.subr.mxu0 0.0
    %504 = vmatpush1.msra.mxu0 0.0
    %505 = vmatprep.subr.mxu0 0.0
    %506 = vmatpush1.msra.mxu0 0.0
    %507 = vmatprep.subr.mxu0 0.0
    %508 = vmatpush1.msra.mxu0 0.0
    %509 = vmatprep.subr.mxu0 0.0
    %510 = vmatpush1.msra.mxu0 0.0
    %511 = vmatprep.subr.mxu0 0.0
    %512 = vmatpush1.msra.mxu0 0.0
    %513 = vmatprep.subr.mxu0 0.0
    %514 = vmatpush1.msra.mxu0 0.0
    %515 = vmatprep.subr.mxu0 0.0
    %516 = vmatpush1.msra.mxu0 0.0
    %517 = vmatprep.subr.mxu0 0.0
    %518 = vmatpush1.msra.mxu0 0.0
    %519 = vmatprep.subr.mxu0 0.0
    %520 = vmatpush1.msra.mxu0 0.0
    %521 = vmatprep.subr.mxu0 0.0
    %522 = vmatpush1.msra.mxu0 0.0
    %523 = vmatprep.subr.mxu0 0.0
    %524 = vmatpush1.msra.mxu0 0.0
    %525 = vmatprep.subr.mxu0 0.0
    %526 = vmatpush1.msra.mxu0 0.0
    %527 = vmatprep.subr.mxu0 0.0
    %528 = vmatpush1.msra.mxu0 0.0
    %529 = vmatprep.subr.mxu0 0.0
    %530 = vmatpush1.msra.mxu0 0.0
    %531 = vmatprep.subr.mxu0 0.0
    %532 = vmatpush1.msra.mxu0 0.0
    %533 = vmatprep.subr.mxu0 0.0
    %534 = vmatpush1.msra.mxu0 0.0
    %535 = vmatprep.subr.mxu0 0.0
    %536 = vmatpush1.msra.mxu0 0.0
    %537 = vmatprep.subr.mxu0 0.0
    %538 = vmatpush1.msra.mxu0 0.0
    %539 = vmatprep.subr.mxu0 0.0
    %540 = vmatpush1.msra.mxu0 0.0
    %541 = vmatprep.mubr.f32.mxu0 0.0
    %542 = vmatmul.mubr.f32.gmra.mrb[0].mxu0 %v475
    %v543 = vpop.f32.mrb[0].mxu0
    %v544 = vadd.f32 %v472, %v543
    %v545 = vpop.f32.mrb[0].mxu0
    %546 = vdwg.mxu0
    %v547 = vmax.f32 %v544, 0.0
    %v548 = vand.u32 2147483647, %v544
    %v549 = vsub.f32 0.0, %v548
    %v550 = vmul.f32 %v549, 1.442695
    %v551 = vpow.pop %v550
    %v552 = vadd.f32 %v551, 1.0
    %v553 = vlog2.pop %v552
    %v554 = vmul.f32 %v553, 0.6931472
    %v555 = vmul.f32 -0.5, %v551
    %v556 = vadd.f32 %v555, 1.0
    %v557 = vmul.f32 %v556, %v551
    %v558 = vand.u32 2147483647, %v551
    %vm559 = vcmp.lt.f32.partialorder %v558, 0.0004427343
    %v560 = vsel %vm559, %v557, %v554
    %v561 = vadd.f32 %v547, %v560
    %v562 = vsub.f32 0.0, %v561
    %v563 = vsub.f32 %v544, %v561
    %v565 = vrot.slane %v563, 7
    %vm567 = vcmask 1040384
    %v568 = vsel %vm567, %v562, %v565
    %569 = vst [vmem:[#allocation3] sm:$0x3] %v568
    // Predicated region
    $region38: #{tpu_custom_call.1} parent=1 // pred_check
      _
    $region39: #{tpu_custom_call.1} parent=1 // pred_check_branch
      %571 = sbr.rel (0) target = $region41
    $region40: #{tpu_custom_call.1} parent=1 // pred_region
      %s573 = ssub.s32 32, 32
      %574 = vsyncadd [#allocation4], %s573
      %s576 = sshll.u32 [#allocation3], 4
      %s577 = int_to_ptr.vmem [resolvable:$true] %s576
      %579 = dma.vmem_to_hbm [thread:$0]  %s577, 32, %s9, [#allocation4]
    $region41: #{tpu_custom_call.1} parent=1 // pred_fallthru
      _
    // Predicated region
    $region42: #{tpu_custom_call.1} parent=1 // pred_check
      _
    $region43: #{tpu_custom_call.1} parent=1 // pred_check_branch
      %581 = sbr.rel (0) target = $region45
    $region44: #{tpu_custom_call.1} parent=1 // pred_region
      %582 = dma.done [#allocation4], 32
    $region45: #{tpu_custom_call.1} parent=1 // pred_fallthru
      _
    %583 = vsyncpa [#allocation4], 1

</llo_original>
